<compile_context>
chip_gen: v6e
topology: v6e:2x2x1
jax: 0.10.0
libtpu: 0.0.40
codegen_flags: <defaults>
</compile_context>

<pallas_src>
import jax
import jax.numpy as jnp
from jax.experimental import pallas as pl
from jax.experimental.pallas import tpu as pltpu


def conv_ps_relu_kernel(x_ref, m_ref, o_ref):
    # x_ref: (1, H, W*Cin)           one batch element, NHWC flattened (lane = w*Cin + c)
    # m_ref: (3*W*Cin, r*W*r*out_ch) banded conv-as-matmul weight, pixel-shuffle permuted cols
    # o_ref: (1, H, r*W*r*out_ch)    lane-dense output (col = i*W*r*out_ch + w*r*out_ch + j*out_ch + c)
    x = x_ref[0]                                  # (H, W*Cin)
    z = jnp.zeros((1, x.shape[1]), x.dtype)
    up = jnp.concatenate([z, x[:-1, :]], axis=0)  # rows h-1 (vertical zero halo, top)
    dn = jnp.concatenate([x[1:, :], z], axis=0)   # rows h+1 (vertical zero halo, bottom)
    cc = jnp.concatenate([up, x, dn], axis=1)     # (H, 3*W*Cin) "im2col-lite", lanes only

    acc = jnp.dot(cc, m_ref[...], preferred_element_type=jnp.float32)
    acc = jnp.maximum(acc, 0.0)                   # ReLU (commutes with pixel shuffle)
    o_ref[...] = acc[None].astype(o_ref.dtype)


def upsample_pixel_shuffle(x_nchw, weight_oihw, up_scale=2):
    """Forward pass of UpSamplePixelShuffle.

    x_nchw:      (N, in_ch, H, W)
    weight_oihw: (out_ch * r * r, in_ch, 3, 3)   PyTorch OIHW conv weight, no bias
    returns:     (N, out_ch, H * r, W * r)
    """
    N, Cin, H, W = x_nchw.shape
    Ct = weight_oihw.shape[0]
    r = up_scale
    out_ch = Ct // (r * r)
    K = 3 * W * Cin                  # contraction dim (kh, w_in, c)
    cols = r * W * r * out_ch        # output lanes (i, w, j, c) -> 256 here

    # NCHW -> (N, H, W*Cin): single fused XLA transpose+reshape (layout glue only).
    x2 = jnp.transpose(x_nchw, (0, 2, 3, 1)).reshape(N, H, W * Cin)

    # Build the banded weight matrix M:
    #   M[kh*W*Cin + w_in*Cin + c,  i*(W*r*out_ch) + w*(r*out_ch) + j*out_ch + c_out]
    #     = weight[c_out*r*r + i*r + j, c, kh, w_in - w + 1]   if 0 <= w_in - w + 1 < 3 else 0
    # The band encodes the kw taps AND the horizontal zero padding; the column
    # ordering encodes PixelShuffle.
    W_r = weight_oihw.reshape(out_ch, r, r, Cin, 3, 3)        # [c_out, i, j, c, kh, kw]
    band = (jnp.arange(W)[:, None, None] - jnp.arange(W)[None, :, None] + 1
            == jnp.arange(3)[None, None, :]).astype(x_nchw.dtype)  # [w_in, w, kw]
    M = jnp.einsum('abk,opqcgk->gacpbqo', band, W_r).reshape(K, cols)

    out = pl.pallas_call(
        conv_ps_relu_kernel,
        out_shape=jax.ShapeDtypeStruct((N, H, cols), x_nchw.dtype),
        grid_spec=pltpu.PrefetchScalarGridSpec(
            num_scalar_prefetch=0,
            grid=(N,),
            in_specs=[
                pl.BlockSpec((1, H, W * Cin), lambda n: (n, 0, 0)),
                pl.BlockSpec((K, cols), lambda n: (0, 0)),
            ],
            out_specs=pl.BlockSpec((1, H, cols), lambda n: (n, 0, 0)),
        ),
        compiler_params=pltpu.CompilerParams(
            dimension_semantics=("parallel",)),
    )(x2, M)

    # Kernel output viewed as [n, h, i, w, j, c] -> NCHW (N, out_ch, H*r, W*r).
    # This single transpose is the unavoidable "return NCHW" layout step.
    out6 = out.reshape(N, H, r, W, r, out_ch)
    return jnp.transpose(out6, (0, 5, 1, 2, 3, 4)).reshape(N, out_ch, H * r, W * r)


def _reference(x_nchw, weight_oihw, up_scale=2):
    """Pure-JAX reference reproducing the PyTorch forward exactly."""
    r = up_scale
    conv = jax.lax.conv_general_dilated(
        x_nchw, weight_oihw, window_strides=(1, 1), padding="SAME",
        dimension_numbers=("NCHW", "OIHW", "NCHW"))
    N, Ct, H, W = conv.shape
    out_ch = Ct // (r * r)
    h = conv.reshape(N, out_ch, r, r, H, W)
    h = jnp.transpose(h, (0, 1, 4, 2, 5, 3)).reshape(N, out_ch, H * r, W * r)
    return jnp.maximum(h, 0.0)


if __name__ == "__main__":
    key = jax.random.PRNGKey(0)
    k_x, k_w = jax.random.split(key)

    # Module config: in_ch=4, out_ch=4, up_scale=2 -> conv out channels = 16
    N, in_ch, H, W = 2, 4, 16, 16
    out_ch, up_scale = 4, 2

    x = jax.random.normal(k_x, (N, in_ch, H, W), dtype=jnp.float32)
    fan_in = in_ch * 3 * 3
    weight = jax.random.normal(
        k_w, (out_ch * up_scale * up_scale, in_ch, 3, 3),
        dtype=jnp.float32) * (2.0 / fan_in) ** 0.5

    out = upsample_pixel_shuffle(x, weight, up_scale=up_scale)
    out = jax.block_until_ready(out)

    ref = jax.block_until_ready(_reference(x, weight, up_scale=up_scale))
    assert out.shape == (N, out_ch, H * up_scale, W * up_scale), out.shape
    assert jnp.allclose(out, ref, atol=1e-4, rtol=1e-4), "mismatch vs reference"

    print("KERNEL_OK")
</pallas_src>

<mosaic_0001>
module attributes {stable_mosaic.version = 11 : i64} {
  func.func @conv_ps_relu_kernel(%arg0: i32, %arg1: memref<1x16x64xf32, #tpu.memory_space<vmem>>, %arg2: memref<192x256xf32, #tpu.memory_space<vmem>>, %arg3: memref<1x16x256xf32, #tpu.memory_space<vmem>>) attributes {dimension_semantics = [#tpu.dimension_semantics<parallel>], iteration_bounds = array<i64: 2>, scalar_prefetch = 0 : i64, scratch_operands = 0 : i64, tpu.core_type = #tpu.core_type<tc>, window_params = [{transform_indices = @transform_0, window_bounds = array<i64: 1, 16, 64>}, {pipeline_mode = #tpu.pipeline_mode<synchronous>, transform_indices = @transform_1, window_bounds = array<i64: 192, 256>}, {transform_indices = @transform_2, window_bounds = array<i64: 1, 16, 256>}]} {
    %c0 = arith.constant 0 : index
    %c0_0 = arith.constant 0 : index
    %c0_1 = arith.constant 0 : index
    %0 = vector.load %arg1[%c0, %c0_0, %c0_1] : memref<1x16x64xf32, #tpu.memory_space<vmem>>, vector<1x16x64xf32>
    %1 = vector.shape_cast %0 : vector<1x16x64xf32> to vector<16x64xf32>
    %cst = arith.constant 0.000000e+00 : f32
    %2 = vector.broadcast %cst : f32 to vector<1x64xf32>
    %3 = vector.extract_strided_slice %1 {offsets = [0, 0], sizes = [15, 64], strides = [1, 1]} : vector<16x64xf32> to vector<15x64xf32>
    %4 = tpu.concatenate %2, %3 in 0 : vector<1x64xf32>, vector<15x64xf32> -> vector<16x64xf32>
    %5 = vector.extract_strided_slice %1 {offsets = [1, 0], sizes = [15, 64], strides = [1, 1]} : vector<16x64xf32> to vector<15x64xf32>
    %6 = tpu.concatenate %5, %2 in 0 : vector<15x64xf32>, vector<1x64xf32> -> vector<16x64xf32>
    %7 = tpu.concatenate %4, %1, %6 in 1 : vector<16x64xf32>, vector<16x64xf32>, vector<16x64xf32> -> vector<16x192xf32>
    %c0_2 = arith.constant 0 : index
    %c0_3 = arith.constant 0 : index
    %8 = vector.load %arg2[%c0_2, %c0_3] : memref<192x256xf32, #tpu.memory_space<vmem>>, vector<192x256xf32>
    %cst_4 = arith.constant dense<0.000000e+00> : vector<16x256xf32>
    %9 = tpu.matmul %7, %8, %cst_4 {dimension_numbers = #tpu.dot_dimension_numbers<[1], [0], [0], [1], [0, 0, 1, 1], [], []>} : vector<16x192xf32>, vector<192x256xf32>, vector<16x256xf32> -> vector<16x256xf32>
    %cst_5 = arith.constant 0.000000e+00 : f32
    %10 = vector.broadcast %cst_5 : f32 to vector<16x256xf32>
    %11 = arith.maximumf %9, %10 : vector<16x256xf32>
    %12 = vector.shape_cast %11 : vector<16x256xf32> to vector<1x16x256xf32>
    %c0_6 = arith.constant 0 : index
    %c0_7 = arith.constant 0 : index
    %c0_8 = arith.constant 0 : index
    %13 = vector.load %arg3[%c0_6, %c0_7, %c0_8] : memref<1x16x256xf32, #tpu.memory_space<vmem>>, vector<1x16x256xf32>
    tpu.vector_store %arg3[%c0_6, %c0_7, %c0_8], %12 {strides = array<i32>} : memref<1x16x256xf32, #tpu.memory_space<vmem>>, vector<1x16x256xf32>,
    return
  }
  func.func @transform_0(%arg0: i32) -> (i32, i32, i32) {
    %c0_i32 = arith.constant 0 : i32
    %c0_i32_0 = arith.constant 0 : i32
    %c0_i32_1 = arith.constant 0 : i32
    return %arg0, %c0_i32, %c0_i32_0 : i32, i32, i32
  }
  func.func @transform_1(%arg0: i32) -> (i32, i32) {
    %c0_i32 = arith.constant 0 : i32
    %c0_i32_0 = arith.constant 0 : i32
    %c0_i32_1 = arith.constant 0 : i32
    return %c0_i32, %c0_i32_0 : i32, i32
  }
  func.func @transform_2(%arg0: i32) -> (i32, i32, i32) {
    %c0_i32 = arith.constant 0 : i32
    %c0_i32_0 = arith.constant 0 : i32
    %c0_i32_1 = arith.constant 0 : i32
    return %arg0, %c0_i32, %c0_i32_0 : i32, i32, i32
  }
}

</mosaic_0001>

<llo_original>
// kernel: tpu_custom_call.1
$region0: #{tpu_custom_call.1}
  #allocation0 [shape = 'u32[]', space=smem, size = 0x4, offset = 0x4, fixed_abs, tag = 'smem constant byte address 0x4 - core index']
  #allocation1 [shape = 'u32[144,128]{1,0:T(1,128)}', space=vmem, size = 0x12000, scoped, tag = 'internal scratch']
  %s0 = inlined_call_operand.hbm [shape: f32[2,16,64], index: 0, kind: input, shape index: {}]
  %s1 = inlined_call_operand.hbm [shape: f32[192,256], index: 1, kind: input, shape index: {}]
  %s2 = inlined_call_operand.hbm [shape: f32[2,16,256], index: 2, kind: output, shape index: {}]
  %s3 = sld [smem:[#allocation0]]
  $region49: #{tpu_custom_call.1} parent=0
    _
  %s5 = ssub.s32 1, %s3
  %s6 = scalar_select 0, %s5, %s3
  $region1: #{tpu_custom_call.1} parent=0
    #allocation2 [shape = 'u8[16384]{0}', space=vmem, size = 0x4000, scoped, tag = 'input window, operand 0']
    #allocation3 [shape = 's32[2]{0}', space=sflag, size = 0x8, scoped, tag = 'scoped memory for tpu_custom_call.1']
    #allocation4 [shape = 's32[2]{0}', space=sflag, size = 0x8, scoped, tag = 'scoped memory for tpu_custom_call.1']
    #allocation5 [shape = 'u8[196608]{0}', space=vmem, size = 0x30000, scoped, tag = 'input window, operand 1, single buffered']
    #allocation6 [shape = 's32[1]{0}', space=sflag, size = 0x4, scoped, tag = 'scoped memory for tpu_custom_call.1']
    #allocation7 [shape = 'u8[32768]{0}', space=vmem, size = 0x8000, scoped, tag = 'output window, operand 0']
    %7 = vsyncpa [#allocation3], 0
    %s8 = scalar_lea.sflag [#allocation3], 1
    %9 = vsyncpa %s8, 0
    %10 = vsyncpa [#allocation6], 0
    %11 = vsyncpa [#allocation4], 0
    %s12 = scalar_lea.sflag [#allocation4], 1
    %13 = vsyncpa %s12, 0
    loop: start=0, step=1, limit=4
    $region2: #{tpu_custom_call.1} parent=1 // loop_pre_header
      _
    $region3: #{tpu_custom_call.1} parent=1 // loop_header
      %s15 = sphi 0, %s19
      %p16 = scmp.ge.s32.totalorder %s15, 4
      %s25 = sphi 0, %s27
      %s28 = sphi 0, %s25
      %s29 = sphi 0, %s28
      %s45 = sphi 0, %s29
      %s49 = sphi 0, %s49
      %s51 = sphi 0, %s49
      %s52 = sphi 0, %s51
      %s66 = sphi 0, %s52
      %s72 = sphi 0, %s74
      %s75 = sphi 0, %s72
      %s76 = sphi 0, %s75
      %s92 = sphi 0, %s76
    $region4: #{tpu_custom_call.1} parent=1 // loop_header_branch
      %18 = sbr.rel (%p16) target = $region8
    $region5: #{tpu_custom_call.1} parent=1 // loop_body
      %s20 = ssub.s32 %s15, 1
      %s21 = ssub.s32 %s15, 2
      %s22 = sadd.s32 %s15, 1
      %s23 = ssub.s32 %s15, %s22
      %p24 = scmp.eq.s32.totalorder %s23, 0
      %s26 = sadd.s32 %s25, 1
      %s27 = scalar_select %p24, %s25, %s26
      %p30 = pneg %p24
      %p31 = scmp.eq.s32.totalorder %s15, 1
      %p32 = por %p30, %p31
      %p33 = scmp.ne.s32.totalorder %s25, %s28
      %p34 = scmp.eq.s32.totalorder %s15, 0
      %p35 = por %p33, %p34
      %p36 = scmp.ne.s32.totalorder %s25, %s28
      %p37 = scmp.eq.s32.totalorder %s20, 1
      %p38 = por %p36, %p37
      %p39 = scmp.ne.s32.totalorder %s28, %s29
      %p40 = scmp.eq.s32.totalorder %s20, 0
      %p41 = por %p39, %p40
      %p42 = scmp.ne.s32.totalorder %s28, %s29
      %p43 = scmp.eq.s32.totalorder %s21, 1
      %p44 = por %p42, %p43
      %p46 = scmp.ne.s32.totalorder %s29, %s45
      %p47 = scmp.eq.s32.totalorder %s21, 0
      %p48 = por %p46, %p47
      %s50 = sadd.s32 %s49, 1
      %p53 = scmp.eq.s32.totalorder %s15, 1
      %p54 = scmp.ne.s32.totalorder %s49, %s51
      %p55 = scmp.eq.s32.totalorder %s15, 0
      %p56 = por %p54, %p55
      %p57 = scmp.ne.s32.totalorder %s49, %s51
      %p58 = scmp.eq.s32.totalorder %s20, 1
      %p59 = por %p57, %p58
      %p60 = scmp.ne.s32.totalorder %s51, %s52
      %p61 = scmp.eq.s32.totalorder %s20, 0
      %p62 = por %p60, %p61
      %p63 = scmp.ne.s32.totalorder %s51, %s52
      %p64 = scmp.eq.s32.totalorder %s21, 1
      %p65 = por %p63, %p64
      %p67 = scmp.ne.s32.totalorder %s52, %s66
      %p68 = scmp.eq.s32.totalorder %s21, 0
      %p69 = por %p67, %p68
      %s70 = ssub.s32 %s15, %s22
      %p71 = scmp.eq.s32.totalorder %s70, 0
      %s73 = sadd.s32 %s72, 1
      %s74 = scalar_select %p71, %s72, %s73
      %p77 = pneg %p71
      %p78 = scmp.eq.s32.totalorder %s15, 1
      %p79 = por %p77, %p78
      %p80 = scmp.ne.s32.totalorder %s72, %s75
      %p81 = scmp.eq.s32.totalorder %s15, 0
      %p82 = por %p80, %p81
      %p83 = scmp.ne.s32.totalorder %s72, %s75
      %p84 = scmp.eq.s32.totalorder %s20, 1
      %p85 = por %p83, %p84
      %p86 = scmp.ne.s32.totalorder %s75, %s76
      %p87 = scmp.eq.s32.totalorder %s20, 0
      %p88 = por %p86, %p87
      %p89 = scmp.ne.s32.totalorder %s75, %s76
      %p90 = scmp.eq.s32.totalorder %s21, 1
      %p91 = por %p89, %p90
      %p93 = scmp.ne.s32.totalorder %s76, %s92
      %p94 = scmp.eq.s32.totalorder %s21, 0
      %p95 = por %p93, %p94
      %p96 = scmp.le.s32.totalorder 1, %s15
      %p97 = scmp.lt.s32.totalorder %s15, 3
      %p98 = pnand %p96, %p97
      %p99 = pneg %p98
      // Predicated region
      $region9: #{tpu_custom_call.1} parent=5 // pred_check
        _
      $region10: #{tpu_custom_call.1} parent=5 // pred_check_branch
        %101 = sbr.rel (%p98) target = $region12
      $region11: #{tpu_custom_call.1} parent=5 // pred_region
        %s102 = ssub.s32 %s15, 1
        // Predicated region
        $region13: #{tpu_custom_call.1} parent=11 // pred_check
          %p103 = pneg %p62
        $region14: #{tpu_custom_call.1} parent=11 // pred_check_branch
          %105 = sbr.rel (%p103) target = $region16
        $region15: #{tpu_custom_call.1} parent=11 // pred_region
          %s107 = ssub.s32 6144, 6144
          %108 = vsyncadd [#allocation6], %s107
          %s109 = sshll.u32 [#allocation5], 4
          %s110 = int_to_ptr.vmem [resolvable:$true] %s109
          %115 = dma.hbm_to_vmem [thread:$0]  %s1, 6144, %s110, [#allocation6], 256, 256, 16
        $region16: #{tpu_custom_call.1} parent=11 // pred_fallthru
          _
      $region12: #{tpu_custom_call.1} parent=5 // pred_fallthru
        _
      %p116 = scmp.lt.s32.totalorder %s15, 2
      // Predicated region
      $region17: #{tpu_custom_call.1} parent=5 // pred_check
        %p117 = pneg %p116
      $region18: #{tpu_custom_call.1} parent=5 // pred_check_branch
        %119 = sbr.rel (%p117) target = $region20
      $region19: #{tpu_custom_call.1} parent=5 // pred_region
        // Predicated region
        $region21: #{tpu_custom_call.1} parent=19 // pred_check
          %p120 = pneg %p35
        $region22: #{tpu_custom_call.1} parent=19 // pred_check_branch
          %122 = sbr.rel (%p120) target = $region24
        $region23: #{tpu_custom_call.1} parent=19 // pred_region
          %s123 = sand.u32 %s25, 1
          %s124 = scalar_lea.sflag [#allocation3], %s123
          %s125 = sand.u32 %s25, 1
          %s126 = smul.addr %s125, 16
          %s127 = scalar_lea.vmem [#allocation2], %s126
          %s129 = ssub.s32 256, 256
          %130 = vsyncadd %s124, %s129
          %s131 = smul.addr %s15, 2
          %s132 = smul.addr %s131, 128
          %s133 = scalar_lea.hbm %s0, %s132
          %s134 = sshll.u32 %s127, 4
          %s135 = int_to_ptr.vmem [resolvable:$true] %s134
          %140 = dma.hbm_to_vmem [thread:$0]  %s133, 256, %s135, %s124, 128, 128, 8
        $region24: #{tpu_custom_call.1} parent=19 // pred_fallthru
          _
      $region20: #{tpu_custom_call.1} parent=5 // pred_fallthru
        _
      %p141 = scmp.le.s32.totalorder 1, %s15
      %p142 = scmp.lt.s32.totalorder %s15, 3
      %p143 = pnand %p141, %p142
      %p144 = pneg %p143
      // Predicated region
      $region25: #{tpu_custom_call.1} parent=5 // pred_check
        _
      $region26: #{tpu_custom_call.1} parent=5 // pred_check_branch
        %146 = sbr.rel (%p143) target = $region28
      $region27: #{tpu_custom_call.1} parent=5 // pred_region
        %s147 = ssub.s32 %s15, 1
        %s148 = sand.u32 %s28, 1
        %s149 = scalar_lea.sflag [#allocation3], %s148
        %s150 = sand.u32 %s28, 1
        %s151 = smul.addr %s150, 16
        %s152 = scalar_lea.vmem [#allocation2], %s151
        // Predicated region
        $region29: #{tpu_custom_call.1} parent=27 // pred_check
          %p153 = pneg %p41
        $region30: #{tpu_custom_call.1} parent=27 // pred_check_branch
          %155 = sbr.rel (%p153) target = $region32
        $region31: #{tpu_custom_call.1} parent=27 // pred_region
          %156 = dma.done %s149, 256
        $region32: #{tpu_custom_call.1} parent=27 // pred_fallthru
          _
        // Predicated region
        $region33: #{tpu_custom_call.1} parent=27 // pred_check
          %p157 = pneg %p62
        $region34: #{tpu_custom_call.1} parent=27 // pred_check_branch
          %159 = sbr.rel (%p157) target = $region36
        $region35: #{tpu_custom_call.1} parent=27 // pred_region
          %160 = dma.done [#allocation6], 6144
        $region36: #{tpu_custom_call.1} parent=27 // pred_fallthru
          _
        %s161 = sand.u32 %s28, 1
        %s162 = scalar_lea.sflag [#allocation3], %s161
        %s163 = sand.u32 %s28, 1
        %s164 = smul.addr %s163, 16
        %s165 = scalar_lea.vmem [#allocation2], %s164
        %p166 = pneg %p41
        %p167 = pneg %p38
        %p168 = pneg %p62
        %p169 = pneg %p59
        %p170 = pneg %p88
        %p171 = pneg %p85
        %s172 = sand.u32 %s75, 1
        %s173 = scalar_lea.sflag [#allocation4], %s172
        %s174 = sand.u32 %s75, 1
        %s175 = smul.addr %s174, 32
        %s176 = scalar_lea.vmem [#allocation7], %s175
        %v177 = vld [vmem:[%s152] sm:$0xff]
        %v178 = vld [vmem:[%s152 + $0x8] sm:$0xff]
        %vm181 = vcmask 1040384
        %v182 = vrot.slane %v177, 7
        %v183 = vrot.slane %v178, 7
        %v184 = vsel %vm181, %v182, %v183
        %v187 = vsel %vm181, 0.0, %v182
        %vm188 = vcmask 1046528
        %v189 = vrot.slane %v177, 1
        %v190 = vrot.slane %v178, 1
        %v191 = vsel %vm188, %v189, %v190
        %v193 = vsel %vm188, %v190, 0.0
        %194 = vrot.lane.b32.xlu0 %v177, 64
        %v195 = vpop.permute.xlu0 %194
        %196 = vrot.lane.b32.xlu0 %v178, 64
        %v197 = vpop.permute.xlu0 %196
        %vm200 = vcmask 523264
        %v201 = vsel %vm200, %v187, %v195
        %v202 = vsel %vm200, %v184, %v197
        %v203 = vld [vmem:[#allocation5] sm:$0xff]
        %v204 = vld [vmem:[#allocation5 + $0x8] sm:$0xff]
        %v205 = vld [vmem:[#allocation5 + $0x10] sm:$0xff]
        %v206 = vld [vmem:[#allocation5 + $0x18] sm:$0xff]
        %v207 = vld [vmem:[#allocation5 + $0x20] sm:$0xff]
        %v208 = vld [vmem:[#allocation5 + $0x28] sm:$0xff]
        %v209 = vld [vmem:[#allocation5 + $0x30] sm:$0xff]
        %v210 = vld [vmem:[#allocation5 + $0x38] sm:$0xff]
        %v211 = vld [vmem:[#allocation5 + $0x40] sm:$0xff]
        %v212 = vld [vmem:[#allocation5 + $0x48] sm:$0xff]
        %v213 = vld [vmem:[#allocation5 + $0x50] sm:$0xff]
        %v214 = vld [vmem:[#allocation5 + $0x58] sm:$0xff]
        %v215 = vld [vmem:[#allocation5 + $0x60] sm:$0xff]
        %v216 = vld [vmem:[#allocation5 + $0x68] sm:$0xff]
        %v217 = vld [vmem:[#allocation5 + $0x70] sm:$0xff]
        %v218 = vld [vmem:[#allocation5 + $0x78] sm:$0xff]
        %v219 = vld [vmem:[#allocation5 + $0x80] sm:$0xff]
        %v220 = vld [vmem:[#allocation5 + $0x88] sm:$0xff]
        %v221 = vld [vmem:[#allocation5 + $0x90] sm:$0xff]
        %v222 = vld [vmem:[#allocation5 + $0x98] sm:$0xff]
        %v223 = vld [vmem:[#allocation5 + $0xa0] sm:$0xff]
        %v224 = vld [vmem:[#allocation5 + $0xa8] sm:$0xff]
        %v225 = vld [vmem:[#allocation5 + $0xb0] sm:$0xff]
        %v226 = vld [vmem:[#allocation5 + $0xb8] sm:$0xff]
        %v227 = vld [vmem:[#allocation5 + $0xc0] sm:$0xff]
        %v228 = vld [vmem:[#allocation5 + $0xc8] sm:$0xff]
        %v229 = vld [vmem:[#allocation5 + $0xd0] sm:$0xff]
        %v230 = vld [vmem:[#allocation5 + $0xd8] sm:$0xff]
        %v231 = vld [vmem:[#allocation5 + $0xe0] sm:$0xff]
        %v232 = vld [vmem:[#allocation5 + $0xe8] sm:$0xff]
        %v233 = vld [vmem:[#allocation5 + $0xf0] sm:$0xff]
        %v234 = vld [vmem:[#allocation5 + $0xf8] sm:$0xff]
        %v235 = vld [vmem:[#allocation5 + $0x100] sm:$0xff]
        %v236 = vld [vmem:[#allocation5 + $0x108] sm:$0xff]
        %v237 = vld [vmem:[#allocation5 + $0x110] sm:$0xff]
        %v238 = vld [vmem:[#allocation5 + $0x118] sm:$0xff]
        %v239 = vld [vmem:[#allocation5 + $0x120] sm:$0xff]
        %v240 = vld [vmem:[#allocation5 + $0x128] sm:$0xff]
        %v241 = vld [vmem:[#allocation5 + $0x130] sm:$0xff]
        %v242 = vld [vmem:[#allocation5 + $0x138] sm:$0xff]
        %v243 = vld [vmem:[#allocation5 + $0x140] sm:$0xff]
        %v244 = vld [vmem:[#allocation5 + $0x148] sm:$0xff]
        %v245 = vld [vmem:[#allocation5 + $0x150] sm:$0xff]
        %v246 = vld [vmem:[#allocation5 + $0x158] sm:$0xff]
        %v247 = vld [vmem:[#allocation5 + $0x160] sm:$0xff]
        %v248 = vld [vmem:[#allocation5 + $0x168] sm:$0xff]
        %v249 = vld [vmem:[#allocation5 + $0x170] sm:$0xff]
        %v250 = vld [vmem:[#allocation5 + $0x178] sm:$0xff]
        %v251 = vsel %vm200, %v191, 0
        %v254 = vsel %vm200, %v193, 0
        %256 = vmatprep.subr.mxu0 %v234
        %257 = vmatpush1.msra.mxu0 %v233
        %258 = vmatprep.subr.mxu0 %v232
        %259 = vmatpush1.msra.mxu0 %v231
        %260 = vmatprep.subr.mxu0 %v230
        %261 = vmatpush1.msra.mxu0 %v229
        %262 = vmatprep.subr.mxu0 %v228
        %263 = vmatpush1.msra.mxu0 %v227
        %264 = vmatprep.subr.mxu0 %v226
        %265 = vmatpush1.msra.mxu0 %v225
        %266 = vmatprep.subr.mxu0 %v224
        %267 = vmatpush1.msra.mxu0 %v223
        %268 = vmatprep.subr.mxu0 %v222
        %269 = vmatpush1.msra.mxu0 %v221
        %270 = vmatprep.subr.mxu0 %v220
        %271 = vmatpush1.msra.mxu0 %v219
        %272 = vmatprep.subr.mxu0 %v218
        %273 = vmatpush1.msra.mxu0 %v217
        %274 = vmatprep.subr.mxu0 %v216
        %275 = vmatpush1.msra.mxu0 %v215
        %276 = vmatprep.subr.mxu0 %v214
        %277 = vmatpush1.msra.mxu0 %v213
        %278 = vmatprep.subr.mxu0 %v212
        %279 = vmatpush1.msra.mxu0 %v211
        %280 = vmatprep.subr.mxu0 %v210
        %281 = vmatpush1.msra.mxu0 %v209
        %282 = vmatprep.subr.mxu0 %v208
        %283 = vmatpush1.msra.mxu0 %v207
        %284 = vmatprep.subr.mxu0 %v206
        %285 = vmatpush1.msra.mxu0 %v205
        %286 = vmatprep.subr.mxu0 %v204
        %287 = vmatpush1.msra.mxu0 %v203
        %288 = vmatprep.subr.mxu0 0.0
        %289 = vmatpush2.msra.mxu0 0.0
        %290 = vmatprep.subr.mxu0 0.0
        %291 = vmatpush2.msra.mxu0 0.0
        %292 = vmatprep.subr.mxu0 0.0
        %293 = vmatpush2.msra.mxu0 0.0
        %294 = vmatprep.subr.mxu0 0.0
        %295 = vmatpush2.msra.mxu0 0.0
        %296 = vmatprep.subr.mxu0 0.0
        %297 = vmatpush2.msra.mxu0 0.0
        %298 = vmatprep.subr.mxu0 0.0
        %299 = vmatpush2.msra.mxu0 0.0
        %300 = vmatprep.subr.mxu0 0.0
        %301 = vmatpush2.msra.mxu0 0.0
        %302 = vmatprep.subr.mxu0 0.0
        %303 = vmatpush2.msra.mxu0 0.0
        %304 = vmatprep.subr.mxu0 %v250
        %305 = vmatpush2.msra.mxu0 %v249
        %306 = vmatprep.subr.mxu0 %v248
        %307 = vmatpush2.msra.mxu0 %v247
        %308 = vmatprep.subr.mxu0 %v246
        %309 = vmatpush2.msra.mxu0 %v245
        %310 = vmatprep.subr.mxu0 %v244
        %311 = vmatpush2.msra.mxu0 %v243
        %312 = vmatprep.subr.mxu0 %v242
        %313 = vmatpush2.msra.mxu0 %v241
        %314 = vmatprep.subr.mxu0 %v240
        %315 = vmatpush2.msra.mxu0 %v239
        %316 = vmatprep.subr.mxu0 %v238
        %317 = vmatpush2.msra.mxu0 %v237
        %318 = vmatprep.subr.mxu0 %v236
        %319 = vmatpush2.msra.mxu0 %v235
        %320 = vmatprep.mubr.f32.mxu0 %v251
        %321 = vmatmul.mubr.f32.gmra.mxu0 %v201
        %v322 = vpop.f32.mrf.mxu0
        %v323 = vadd.f32 0.0, %v322
        %v324 = vpop.f32.mrf.mxu0
        %v325 = vadd.f32 0.0, %v324
        %326 = vmatprep.mubr.f32.mxu0 %v254
        %327 = vmatmul.mubr.f32.gmra.mxu0 %v202
        %v328 = vpop.f32.mrf.mxu0
        %v329 = vadd.f32 0.0, %v328
        %v330 = vpop.f32.mrf.mxu0
        %v331 = vadd.f32 0.0, %v330
        %332 = vdwg.mxu0
        %v333 = vmax.f32 %v323, 0.0
        %v334 = vmax.f32 %v325, 0.0
        %v335 = vmax.f32 %v329, 0.0
        %v336 = vmax.f32 %v331, 0.0
        %337 = vst [vmem:[%s176] sm:$0xff] %v333
        %338 = vst [vmem:[%s176 + $0x8] sm:$0xff] %v334
        %339 = vst [vmem:[%s176 + $0x10] sm:$0xff] %v335
        %340 = vst [vmem:[%s176 + $0x18] sm:$0xff] %v336
        %s341 = sand.u32 %s75, 1
        %s342 = scalar_lea.sflag [#allocation4], %s341
        %s343 = sand.u32 %s75, 1
        %s344 = smul.addr %s343, 32
        %s345 = scalar_lea.vmem [#allocation7], %s344
        // Predicated region
        $region37: #{tpu_custom_call.1} parent=27 // pred_check
          %p346 = pneg %p85
        $region38: #{tpu_custom_call.1} parent=27 // pred_check_branch
          %348 = sbr.rel (%p346) target = $region40
        $region39: #{tpu_custom_call.1} parent=27 // pred_region
          %s350 = ssub.s32 512, 512
          %351 = vsyncadd %s342, %s350
          %s352 = smul.addr %s20, 4
          %s353 = smul.addr %s352, 128
          %s354 = scalar_lea.hbm %s2, %s353
          %s355 = sshll.u32 %s345, 4
          %s356 = int_to_ptr.vmem [resolvable:$true] %s355
          %361 = dma.vmem_to_hbm [thread:$0]  %s356, 512, %s354, %s342, 256, 256, 16
        $region40: #{tpu_custom_call.1} parent=27 // pred_fallthru
          _
      $region28: #{tpu_custom_call.1} parent=5 // pred_fallthru
        _
      %p362 = scmp.le.s32.totalorder 2, %s15
      // Predicated region
      $region41: #{tpu_custom_call.1} parent=5 // pred_check
        %p363 = pneg %p362
      $region42: #{tpu_custom_call.1} parent=5 // pred_check_branch
        %365 = sbr.rel (%p363) target = $region44
      $region43: #{tpu_custom_call.1} parent=5 // pred_region
        %s366 = ssub.s32 %s15, 2
        // Predicated region
        $region45: #{tpu_custom_call.1} parent=43 // pred_check
          %p367 = pneg %p91
        $region46: #{tpu_custom_call.1} parent=43 // pred_check_branch
          %369 = sbr.rel (%p367) target = $region48
        $region47: #{tpu_custom_call.1} parent=43 // pred_region
          %s370 = sand.u32 %s76, 1
          %s371 = scalar_lea.sflag [#allocation4], %s370
          %s372 = sand.u32 %s76, 1
          %s373 = smul.addr %s372, 32
          %s374 = scalar_lea.vmem [#allocation7], %s373
          %375 = dma.done %s371, 512
        $region48: #{tpu_custom_call.1} parent=43 // pred_fallthru
          _
      $region44: #{tpu_custom_call.1} parent=5 // pred_fallthru
        _
    $region6: #{tpu_custom_call.1} parent=1 // loop_footer
      %s19 = sadd.s32 1, %s15
    $region7: #{tpu_custom_call.1} parent=1 // loop_footer_branch
      %14 = sbr.rel target = $region3
    $region8: #{tpu_custom_call.1} parent=1 // loop_exit
      _
    %376 = vsyncpa [#allocation3], 1
    %s377 = scalar_lea.sflag [#allocation3], 1
    %378 = vsyncpa %s377, 1
    %379 = vsyncpa [#allocation6], 1
    %380 = vsyncpa [#allocation4], 1
    %s381 = scalar_lea.sflag [#allocation4], 1
    %382 = vsyncpa %s381, 1

</llo_original>
